<compile_context>
chip_gen: v5e
topology: v5e:2x2
jax: 0.10.0
libtpu: 0.0.40
codegen_flags: <defaults>
</compile_context>

<pallas_src>
import functools
import math

import jax
import jax.numpy as jnp
from jax.experimental import pallas as pl
from jax.experimental.pallas import tpu as pltpu

NEG_LIMIT = -1e9
_PREC = jax.lax.Precision.HIGHEST          # exact passes for f32 MXU matmuls
_VMEM_LIMIT_BYTES = 64 * 1024 * 1024       # v7x phys = 64 MiB; v5e/v6e = 128 MiB


def _round_up(x, m):
    return ((x + m - 1) // m) * m


# ----------------------------------------------------------------------------
# Kernel 1: fused query projection (q-proj + MHA q-proj + attn scale folded)
#   q = head @ Wf_head + tail @ Wf_tail + b_f
# ----------------------------------------------------------------------------
def _query_proj_kernel(head_ref, tail_ref, wfh_ref, wft_ref, bf_ref, q_ref):
    q = (jnp.dot(head_ref[...], wfh_ref[...], precision=_PREC,
                 preferred_element_type=jnp.float32)
         + jnp.dot(tail_ref[...], wft_ref[...], precision=_PREC,
                   preferred_element_type=jnp.float32)
         + bf_ref[...])
    q_ref[...] = q.astype(q_ref.dtype)


def fused_query_proj(head, tail, wfh, wft, bf, *, tile_m=512):
    B, R, H = head.shape
    M = B * R
    tm = M if M <= tile_m else tile_m          # tile_m is a multiple of 8
    head_f = head.reshape(M, H)                # leading-dim merge: no HBM copy
    tail_f = tail.reshape(M, H)
    cost = pl.CostEstimate(
        flops=4 * M * H * H, transcendentals=0,
        bytes_accessed=4 * (3 * M * H + 2 * H * H + H))
    out = pl.pallas_call(
        _query_proj_kernel,
        out_shape=jax.ShapeDtypeStruct((M, H), head.dtype),
        grid=(pl.cdiv(M, tm),),
        in_specs=[
            pl.BlockSpec((tm, H), lambda i: (i, 0)),
            pl.BlockSpec((tm, H), lambda i: (i, 0)),
            pl.BlockSpec((H, H), lambda i: (0, 0)),   # Wf (head rows), resident
            pl.BlockSpec((H, H), lambda i: (0, 0)),   # Wf (tail rows), resident
            pl.BlockSpec((1, H), lambda i: (0, 0)),
        ],
        out_specs=pl.BlockSpec((tm, H), lambda i: (i, 0)),
        compiler_params=pltpu.CompilerParams(
            dimension_semantics=("parallel",),
            vmem_limit_bytes=_VMEM_LIMIT_BYTES),
        cost_estimate=cost,
    )(head_f, tail_f, wfh, wft, bf)
    return out.reshape(B, R, H)


# ----------------------------------------------------------------------------
# Kernel 2: K / V projection of token_reps (computed ONCE per token, not per
# relation as in the PyTorch code), emitted in bf16 by default.
# ----------------------------------------------------------------------------
def _kv_proj_kernel(tok_ref, wk_ref, bk_ref, wv_ref, bv_ref, k_ref, v_ref):
    t = tok_ref[...]
    k_ref[...] = (jnp.dot(t, wk_ref[...], precision=_PREC,
                          preferred_element_type=jnp.float32)
                  + bk_ref[...]).astype(k_ref.dtype)
    v_ref[...] = (jnp.dot(t, wv_ref[...], precision=_PREC,
                          preferred_element_type=jnp.float32)
                  + bv_ref[...]).astype(v_ref.dtype)


def kv_proj(token_reps, wk, bk, wv, bv, *, out_dtype=jnp.bfloat16, tile_m=512):
    B, S, H = token_reps.shape
    M = B * S
    tm = M if M <= tile_m else tile_m
    tok_f = token_reps.reshape(M, H)
    kv_bytes = jnp.dtype(out_dtype).itemsize
    cost = pl.CostEstimate(
        flops=4 * M * H * H, transcendentals=0,
        bytes_accessed=4 * (M * H + 2 * H * H + 2 * H) + 2 * kv_bytes * M * H)
    k, v = pl.pallas_call(
        _kv_proj_kernel,
        out_shape=(jax.ShapeDtypeStruct((M, H), out_dtype),
                   jax.ShapeDtypeStruct((M, H), out_dtype)),
        grid=(pl.cdiv(M, tm),),
        in_specs=[
            pl.BlockSpec((tm, H), lambda i: (i, 0)),
            pl.BlockSpec((H, H), lambda i: (0, 0)),
            pl.BlockSpec((1, H), lambda i: (0, 0)),
            pl.BlockSpec((H, H), lambda i: (0, 0)),
            pl.BlockSpec((1, H), lambda i: (0, 0)),
        ],
        out_specs=(pl.BlockSpec((tm, H), lambda i: (i, 0)),
                   pl.BlockSpec((tm, H), lambda i: (i, 0))),
        compiler_params=pltpu.CompilerParams(
            dimension_semantics=("parallel",),
            vmem_limit_bytes=_VMEM_LIMIT_BYTES),
        cost_estimate=cost,
    )(tok_f, wk, bk, wv, bv)
    return k.reshape(B, S, H), v.reshape(B, S, H)


# ----------------------------------------------------------------------------
# Kernel 3: masked multi-head cross attention + out projection + zero fill
# ----------------------------------------------------------------------------
def _cross_attn_kernel(q_ref, k_ref, v_ref, mask_ref, wo_ref, bo_ref, o_ref,
                       *, num_heads):
    k = k_ref[0]                                    # (S, H)  kv dtype (bf16/f32)
    v = v_ref[0]                                    # (S, H)
    q = q_ref[0].astype(k.dtype)                    # (TILE_R, H); scale pre-folded
    wo = wo_ref[...]                                # (H, H) f32
    valid = mask_ref[0].astype(jnp.int32) != 0      # (TILE_R, S) bool (int8 mask)
    tr, H = q.shape
    dh = H // num_heads
    # f32 K/V -> exact MXU passes (matches 1e-3 check); bf16 -> single-pass bf16.
    attn_prec = _PREC if k.dtype == jnp.float32 else None

    o = jnp.zeros((tr, H), jnp.float32) + bo_ref[...]   # hoisted bias broadcast
    # TODO(synk): for production dh >= 128 these static head slices are lane
    # aligned; for tiny dh a head-major K1/K2 layout + one head-batched dot
    # (and fusing K2 in under @pl.when(r == 0)) is the next refinement.
    for h in range(num_heads):                      # static unroll, nh is small
        lo = h * dh
        qh = q[:, lo:lo + dh]                       # (TILE_R, dh)
        kh = k[:, lo:lo + dh]                       # (S, dh)
        vh = v[:, lo:lo + dh]                       # (S, dh)
        s = jax.lax.dot_general(qh, kh, (((1,), (1,)), ((), ())),
                                precision=attn_prec,
                                preferred_element_type=jnp.float32)
        s = jnp.where(valid, s, NEG_LIMIT)          # key_padding_mask
        m = jnp.max(s, axis=-1, keepdims=True)
        p = jnp.exp(s - m)                          # unnormalized probabilities
        l = jnp.sum(p, axis=-1, keepdims=True)
        inv_l = pl.reciprocal(l, approx=False)      # (TILE_R,1): off the S tile
        ctx = jnp.dot(p.astype(v.dtype), vh, precision=attn_prec,
                      preferred_element_type=jnp.float32) * inv_l
        # output projection fused per head: W_o split into row blocks -> no concat
        o = o + jnp.dot(ctx, wo[lo:lo + dh, :], precision=_PREC,
                        preferred_element_type=jnp.float32)

    # no-context handler: rels whose mask is all False get a zero context rep
    has_ctx = jnp.any(valid, axis=-1, keepdims=True)                 # (TILE_R, 1)
    o_ref[0] = jnp.where(has_ctx, o, 0.0).astype(o_ref.dtype)


def cross_attention_pool(q, k, v, context_masks, wo, bo, *, num_heads, tile_r=256):
    B, R, H = q.shape
    S = k.shape[1]
    assert H % num_heads == 0
    tr = R if R <= tile_r else tile_r               # tile_r default is mult of 8
    # v7x has 2 TensorCores: expose >= 2 parallel grid steps when B == 1.
    if B == 1 and R >= 64 and R <= tile_r:
        tr = _round_up(pl.cdiv(R, 2), 32)
    mask_i8 = context_masks.astype(jnp.int8)        # 1 byte/elem of HBM traffic
    kernel = functools.partial(_cross_attn_kernel, num_heads=num_heads)
    kv_bytes = jnp.dtype(k.dtype).itemsize
    cost = pl.CostEstimate(
        flops=B * R * (4 * S * H + 2 * H * H),
        transcendentals=B * R * S * num_heads,
        bytes_accessed=4 * (2 * B * R * H + H * H + H)
        + kv_bytes * 2 * B * S * H + B * R * S)
    out = pl.pallas_call(
        kernel,
        out_shape=jax.ShapeDtypeStruct((B, R, H), q.dtype),
        grid=(B, pl.cdiv(R, tr)),
        in_specs=[
            pl.BlockSpec((1, tr, H), lambda b, r: (b, r, 0)),   # q tile
            # K/V block index is constant over r -> stays resident across rel
            # tiles (no re-DMA).  TODO(synk): for very long S on v7x (64 MiB
            # VMEM) add a flash-style S-tile reduction axis / pl.Buffered(1).
            pl.BlockSpec((1, S, H), lambda b, r: (b, 0, 0)),
            pl.BlockSpec((1, S, H), lambda b, r: (b, 0, 0)),
            pl.BlockSpec((1, tr, S), lambda b, r: (b, r, 0)),   # int8 mask tile
            pl.BlockSpec((H, H), lambda b, r: (0, 0)),          # W_o, resident
            pl.BlockSpec((1, H), lambda b, r: (0, 0)),
        ],
        out_specs=pl.BlockSpec((1, tr, H), lambda b, r: (b, r, 0)),
        compiler_params=pltpu.CompilerParams(
            dimension_semantics=("parallel", "parallel"),
            vmem_limit_bytes=_VMEM_LIMIT_BYTES),
        cost_estimate=cost,
    )(q, k, v, mask_i8, wo, bo)
    return out


# ----------------------------------------------------------------------------
# Full forward (matches RelationContextAttentionPoolerCross.forward)
# ----------------------------------------------------------------------------
def relation_context_attention_pooler_cross(params, head, tail, token_reps,
                                            context_masks=None, *, num_heads=4,
                                            kv_dtype=jnp.bfloat16):
    B, R, H = head.shape
    S = token_reps.shape[1]
    if context_masks is None:
        context_masks = jnp.ones((B, R, S), dtype=jnp.bool_)
    dh = H // num_heads
    scale = 1.0 / math.sqrt(dh)
    # Offline weight folding (weights are static):
    #   (x @ Wqp + bqp) @ Wq + bq == x @ (Wqp Wq) + (bqp Wq + bq)
    # and the 1/sqrt(dh) attention scale is folded in as well, since the fused
    # query feeds nothing but QK^T.
    wf = jnp.matmul(params["wqp"], params["wq"], precision=_PREC) * scale
    bf = (jnp.matmul(params["bqp"], params["wq"], precision=_PREC)
          + params["bq"]) * scale
    q = fused_query_proj(head, tail, wf[:H], wf[H:], bf)
    k, v = kv_proj(token_reps, params["wk"], params["bk"],
                   params["wv"], params["bv"], out_dtype=kv_dtype)
    # TODO(synk): attention dropout inside MHAttentionTorch is identity in eval mode.
    return cross_attention_pool(q, k, v, context_masks, params["wo"], params["bo"],
                                num_heads=num_heads)


# ----------------------------------------------------------------------------
# Pure-JAX reference (for correctness check) — precision scoped explicitly,
# no module-level jax_default_matmul_precision global.
# ----------------------------------------------------------------------------
def reference_forward(params, head, tail, token_reps, context_masks, *, num_heads=4):
    B, R, H = head.shape
    S = token_reps.shape[1]
    dh = H // num_heads

    def mm(a, b):
        return jnp.matmul(a, b, precision=_PREC)

    query = mm(jnp.concatenate([head, tail], -1), params["wqp"]) + params["bqp"]
    q = mm(query, params["wq"]) + params["bq"]
    k = mm(token_reps, params["wk"]) + params["bk"]
    v = mm(token_reps, params["wv"]) + params["bv"]
    qh = q.reshape(B, R, num_heads, dh)
    kh = k.reshape(B, S, num_heads, dh)
    vh = v.reshape(B, S, num_heads, dh)
    scores = jnp.einsum('brhd,bshd->bhrs', qh, kh, precision=_PREC) / math.sqrt(dh)
    scores = jnp.where(context_masks[:, None, :, :], scores, NEG_LIMIT)
    p = jax.nn.softmax(scores, axis=-1)
    ctx = jnp.einsum('bhrs,bshd->brhd', p, vh, precision=_PREC).reshape(B, R, H)
    out = mm(ctx, params["wo"]) + params["bo"]
    has_ctx = jnp.any(context_masks, axis=-1, keepdims=True)
    return jnp.where(has_ctx, out, jnp.zeros_like(out))


# ----------------------------------------------------------------------------
if __name__ == "__main__":
    B, S, H = 2, 16, 32          # batch, seq_len, hidden_dim
    R = 8                        # num_rels
    NUM_HEADS = 4

    key = jax.random.PRNGKey(0)
    ks = jax.random.split(key, 9)

    head = jax.random.normal(ks[0], (B, R, H), dtype=jnp.float32)
    tail = jax.random.normal(ks[1], (B, R, H), dtype=jnp.float32)
    token_reps = jax.random.normal(ks[2], (B, S, H), dtype=jnp.float32)

    context_masks = jax.random.bernoulli(ks[3], 0.5, (B, R, S))
    context_masks = context_masks.at[0, 0, :].set(False)   # a no-context relation
    context_masks = context_masks.at[1, 3, :].set(True)    # a full-context relation

    def linear_init(k, fan_in, fan_out):
        kw, kb = jax.random.split(k)
        s = 1.0 / math.sqrt(fan_in)
        return (jax.random.normal(kw, (fan_in, fan_out), jnp.float32) * s,
                jax.random.normal(kb, (1, fan_out), jnp.float32) * s)

    wqp, bqp = linear_init(ks[4], 2 * H, H)     # query_proj: Linear(2H -> H)
    wq, bq = linear_init(ks[5], H, H)           # MHA q / k / v / out projections
    wk, bk = linear_init(ks[6], H, H)
    wv, bv = linear_init(ks[7], H, H)
    wo, bo = linear_init(ks[8], H, H)
    params = dict(wqp=wqp, bqp=bqp, wq=wq, bq=bq, wk=wk, bk=bk,
                  wv=wv, bv=bv, wo=wo, bo=bo)

    ref = reference_forward(params, head, tail, token_reps, context_masks,
                            num_heads=NUM_HEADS)

    # (a) exact f32 path: matches the PyTorch module at tight tolerance.
    out_f32 = relation_context_attention_pooler_cross(
        params, head, tail, token_reps, context_masks,
        num_heads=NUM_HEADS, kv_dtype=jnp.float32)
    out_f32 = jax.block_until_ready(out_f32)
    assert out_f32.shape == (B, R, H)
    assert bool(jnp.all(out_f32[0, 0] == 0.0)), "no-context relation must be zero"
    assert jnp.allclose(out_f32, ref, atol=1e-3, rtol=1e-3), "f32 mismatch vs reference"

    # (b) default bf16-K/V path (perf-review config): validated at bf16-level
    # tolerance (bf16 QK^T / PV inputs, f32 accumulation).
    out_bf16 = relation_context_attention_pooler_cross(
        params, head, tail, token_reps, context_masks, num_heads=NUM_HEADS)
    out_bf16 = jax.block_until_ready(out_bf16)
    assert out_bf16.shape == (B, R, H)
    assert bool(jnp.all(out_bf16[0, 0] == 0.0)), "no-context relation must be zero"
    assert jnp.allclose(out_bf16, ref, atol=5e-2, rtol=5e-2), "bf16 mismatch vs reference"

    print("KERNEL_OK")
</pallas_src>

<mosaic_0001>
module attributes {stable_mosaic.version = 11 : i64} {
  func.func @_query_proj_kernel(%arg0: i32, %arg1: memref<16x32xf32, #tpu.memory_space<vmem>>, %arg2: memref<16x32xf32, #tpu.memory_space<vmem>>, %arg3: memref<32x32xf32, #tpu.memory_space<vmem>>, %arg4: memref<32x32xf32, #tpu.memory_space<vmem>>, %arg5: memref<1x32xf32, #tpu.memory_space<vmem>>, %arg6: memref<16x32xf32, #tpu.memory_space<vmem>>) attributes {dimension_semantics = [#tpu.dimension_semantics<parallel>], iteration_bounds = array<i64: 1>, scalar_prefetch = 0 : i64, scratch_operands = 0 : i64, tpu.core_type = #tpu.core_type<tc>, window_params = [{transform_indices = @transform_0, window_bounds = array<i64: 16, 32>}, {transform_indices = @transform_1, window_bounds = array<i64: 16, 32>}, {pipeline_mode = #tpu.pipeline_mode<synchronous>, transform_indices = @transform_2, window_bounds = array<i64: 32, 32>}, {pipeline_mode = #tpu.pipeline_mode<synchronous>, transform_indices = @transform_3, window_bounds = array<i64: 32, 32>}, {pipeline_mode = #tpu.pipeline_mode<synchronous>, transform_indices = @transform_4, window_bounds = array<i64: 1, 32>}, {transform_indices = @transform_5, window_bounds = array<i64: 16, 32>}]} {
    %c0 = arith.constant 0 : index
    %c0_0 = arith.constant 0 : index
    %0 = vector.load %arg1[%c0, %c0_0] : memref<16x32xf32, #tpu.memory_space<vmem>>, vector<16x32xf32>
    %c0_1 = arith.constant 0 : index
    %c0_2 = arith.constant 0 : index
    %1 = vector.load %arg3[%c0_1, %c0_2] : memref<32x32xf32, #tpu.memory_space<vmem>>, vector<32x32xf32>
    %cst = arith.constant dense<0.000000e+00> : vector<16x32xf32>
    %2 = tpu.matmul %0, %1, %cst {dimension_numbers = #tpu.dot_dimension_numbers<[1], [0], [0], [1], [0, 0, 1, 1], [], []>, precision = #tpu.contract_precision<fp32>} : vector<16x32xf32>, vector<32x32xf32>, vector<16x32xf32> -> vector<16x32xf32>
    %c0_3 = arith.constant 0 : index
    %c0_4 = arith.constant 0 : index
    %3 = vector.load %arg2[%c0_3, %c0_4] : memref<16x32xf32, #tpu.memory_space<vmem>>, vector<16x32xf32>
    %c0_5 = arith.constant 0 : index
    %c0_6 = arith.constant 0 : index
    %4 = vector.load %arg4[%c0_5, %c0_6] : memref<32x32xf32, #tpu.memory_space<vmem>>, vector<32x32xf32>
    %cst_7 = arith.constant dense<0.000000e+00> : vector<16x32xf32>
    %5 = tpu.matmul %3, %4, %cst_7 {dimension_numbers = #tpu.dot_dimension_numbers<[1], [0], [0], [1], [0, 0, 1, 1], [], []>, precision = #tpu.contract_precision<fp32>} : vector<16x32xf32>, vector<32x32xf32>, vector<16x32xf32> -> vector<16x32xf32>
    %6 = arith.addf %2, %5 : vector<16x32xf32>
    %c0_8 = arith.constant 0 : index
    %c0_9 = arith.constant 0 : index
    %7 = vector.load %arg5[%c0_8, %c0_9] : memref<1x32xf32, #tpu.memory_space<vmem>>, vector<1x32xf32>
    %8 = vector.broadcast %7 : vector<1x32xf32> to vector<16x32xf32>
    %9 = arith.addf %6, %8 : vector<16x32xf32>
    %c0_10 = arith.constant 0 : index
    %c0_11 = arith.constant 0 : index
    %10 = vector.load %arg6[%c0_10, %c0_11] : memref<16x32xf32, #tpu.memory_space<vmem>>, vector<16x32xf32>
    tpu.vector_store %arg6[%c0_10, %c0_11], %9 {strides = array<i32>} : memref<16x32xf32, #tpu.memory_space<vmem>>, vector<16x32xf32>,
    return
  }
  func.func @transform_0(%arg0: i32) -> (i32, i32) {
    %c0_i32 = arith.constant 0 : i32
    %c0_i32_0 = arith.constant 0 : i32
    return %arg0, %c0_i32 : i32, i32
  }
  func.func @transform_1(%arg0: i32) -> (i32, i32) {
    %c0_i32 = arith.constant 0 : i32
    %c0_i32_0 = arith.constant 0 : i32
    return %arg0, %c0_i32 : i32, i32
  }
  func.func @transform_2(%arg0: i32) -> (i32, i32) {
    %c0_i32 = arith.constant 0 : i32
    %c0_i32_0 = arith.constant 0 : i32
    %c0_i32_1 = arith.constant 0 : i32
    return %c0_i32, %c0_i32_0 : i32, i32
  }
  func.func @transform_3(%arg0: i32) -> (i32, i32) {
    %c0_i32 = arith.constant 0 : i32
    %c0_i32_0 = arith.constant 0 : i32
    %c0_i32_1 = arith.constant 0 : i32
    return %c0_i32, %c0_i32_0 : i32, i32
  }
  func.func @transform_4(%arg0: i32) -> (i32, i32) {
    %c0_i32 = arith.constant 0 : i32
    %c0_i32_0 = arith.constant 0 : i32
    %c0_i32_1 = arith.constant 0 : i32
    return %c0_i32, %c0_i32_0 : i32, i32
  }
  func.func @transform_5(%arg0: i32) -> (i32, i32) {
    %c0_i32 = arith.constant 0 : i32
    %c0_i32_0 = arith.constant 0 : i32
    return %arg0, %c0_i32 : i32, i32
  }
}

</mosaic_0001>

<llo_original>
// kernel: tpu_custom_call.1
$region0: #{tpu_custom_call.1}
  #allocation0 [shape = 'u32[]', space=smem, size = 0x4, offset = 0x4, fixed_abs, tag = 'smem constant byte address 0x4 - core index']
  #allocation1 [shape = 'u32[72,128]{1,0:T(1,128)}', space=vmem, size = 0x9000, scoped, tag = 'internal scratch']
  %s0 = inlined_call_operand.hbm [shape: f32[16,32], index: 0, kind: input, shape index: {}]
  %s1 = inlined_call_operand.hbm [shape: f32[16,32], index: 1, kind: input, shape index: {}]
  %s2 = inlined_call_operand.hbm [shape: f32[32,32], index: 2, kind: input, shape index: {}]
  %s3 = inlined_call_operand.hbm [shape: f32[32,32], index: 3, kind: input, shape index: {}]
  %s4 = inlined_call_operand.vmem [shape: f32[1,32], index: 4, kind: input, shape index: {}]
  %s5 = inlined_call_operand.hbm [shape: f32[16,32], index: 5, kind: output, shape index: {}]
  %s6 = sld [smem:[#allocation0]]
  $region46: #{tpu_custom_call.1} parent=0
    _
  %s8 = ssub.s32 1, %s6
  %s9 = scalar_select 0, %s8, %s6
  $region1: #{tpu_custom_call.1} parent=0
    #allocation2 [shape = 'u8[8192]{0}', space=vmem, size = 0x2000, scoped, tag = 'input window, operand 0, single buffered']
    #allocation3 [shape = 's32[1]{0}', space=sflag, size = 0x4, scoped, tag = 'scoped memory for tpu_custom_call.1']
    #allocation4 [shape = 's32[1]{0}', space=sflag, size = 0x4, scoped, tag = 'scoped memory for tpu_custom_call.1']
    #allocation5 [shape = 'u8[8192]{0}', space=vmem, size = 0x2000, scoped, tag = 'input window, operand 1, single buffered']
    #allocation6 [shape = 's32[1]{0}', space=sflag, size = 0x4, scoped, tag = 'scoped memory for tpu_custom_call.1']
    #allocation7 [shape = 'u8[16384]{0}', space=vmem, size = 0x4000, scoped, tag = 'input window, operand 2, single buffered']
    #allocation8 [shape = 'u8[16384]{0}', space=vmem, size = 0x4000, scoped, tag = 'input window, operand 3, single buffered']
    #allocation9 [shape = 's32[1]{0}', space=sflag, size = 0x4, scoped, tag = 'scoped memory for tpu_custom_call.1']
    #allocation10 [shape = 'u8[8192]{0}', space=vmem, size = 0x2000, scoped, tag = 'output window, operand 0, single buffered']
    %10 = vsyncpa [#allocation3], 0
    %11 = vsyncpa [#allocation6], 0
    %12 = vsyncpa [#allocation9], 0
    %13 = vsyncpa [#allocation4], 0
    // Predicated region
    $region2: #{tpu_custom_call.1} parent=1 // pred_check
      _
    $region3: #{tpu_custom_call.1} parent=1 // pred_check_branch
      %15 = sbr.rel (0) target = $region5
    $region4: #{tpu_custom_call.1} parent=1 // pred_region
      %17 = vsyncadd [#allocation3], 0
      %s18 = sshll.u32 %s0, 4
      %s19 = int_to_ptr.hbm [resolvable:$true] %s18
      %s20 = sshll.u32 [#allocation2], 4
      %s21 = int_to_ptr.vmem [resolvable:$true] %s20
      %26 = dma.hbm_to_vmem [thread:$0]  %s19, 256, %s21, [#allocation3], 128, 128, 8
    $region5: #{tpu_custom_call.1} parent=1 // pred_fallthru
      _
    // Predicated region
    $region6: #{tpu_custom_call.1} parent=1 // pred_check
      _
    $region7: #{tpu_custom_call.1} parent=1 // pred_check_branch
      %28 = sbr.rel (0) target = $region9
    $region8: #{tpu_custom_call.1} parent=1 // pred_region
      %30 = vsyncadd [#allocation6], 0
      %s31 = sshll.u32 %s1, 4
      %s32 = int_to_ptr.hbm [resolvable:$true] %s31
      %s33 = sshll.u32 [#allocation5], 4
      %s34 = int_to_ptr.vmem [resolvable:$true] %s33
      %39 = dma.hbm_to_vmem [thread:$0]  %s32, 256, %s34, [#allocation6], 128, 128, 8
    $region9: #{tpu_custom_call.1} parent=1 // pred_fallthru
      _
    // Predicated region
    $region10: #{tpu_custom_call.1} parent=1 // pred_check
      _
    $region11: #{tpu_custom_call.1} parent=1 // pred_check_branch
      %41 = sbr.rel (0) target = $region13
    $region12: #{tpu_custom_call.1} parent=1 // pred_region
      %43 = vsyncadd [#allocation6], 0
      %s44 = sshll.u32 %s2, 4
      %s45 = int_to_ptr.hbm [resolvable:$true] %s44
      %s46 = sshll.u32 [#allocation7], 4
      %s47 = int_to_ptr.vmem [resolvable:$true] %s46
      %52 = dma.hbm_to_vmem [thread:$0]  %s45, 512, %s47, [#allocation6], 128, 128, 8
    $region13: #{tpu_custom_call.1} parent=1 // pred_fallthru
      _
    // Predicated region
    $region14: #{tpu_custom_call.1} parent=1 // pred_check
      _
    $region15: #{tpu_custom_call.1} parent=1 // pred_check_branch
      %54 = sbr.rel (0) target = $region17
    $region16: #{tpu_custom_call.1} parent=1 // pred_region
      %56 = vsyncadd [#allocation9], 0
      %s57 = sshll.u32 %s3, 4
      %s58 = int_to_ptr.hbm [resolvable:$true] %s57
      %s59 = sshll.u32 [#allocation8], 4
      %s60 = int_to_ptr.vmem [resolvable:$true] %s59
      %65 = dma.hbm_to_vmem [thread:$0]  %s58, 512, %s60, [#allocation9], 128, 128, 8
    $region17: #{tpu_custom_call.1} parent=1 // pred_fallthru
      _
    // Predicated region
    $region18: #{tpu_custom_call.1} parent=1 // pred_check
      _
    $region19: #{tpu_custom_call.1} parent=1 // pred_check_branch
      %67 = sbr.rel (0) target = $region21
    $region20: #{tpu_custom_call.1} parent=1 // pred_region
      _
    $region21: #{tpu_custom_call.1} parent=1 // pred_fallthru
      _
    // Predicated region
    $region22: #{tpu_custom_call.1} parent=1 // pred_check
      _
    $region23: #{tpu_custom_call.1} parent=1 // pred_check_branch
      %69 = sbr.rel (0) target = $region25
    $region24: #{tpu_custom_call.1} parent=1 // pred_region
      %71 = dma.done [#allocation3], 256
    $region25: #{tpu_custom_call.1} parent=1 // pred_fallthru
      _
    // Predicated region
    $region26: #{tpu_custom_call.1} parent=1 // pred_check
      _
    $region27: #{tpu_custom_call.1} parent=1 // pred_check_branch
      %73 = sbr.rel (0) target = $region29
    $region28: #{tpu_custom_call.1} parent=1 // pred_region
      %75 = dma.done [#allocation6], 256
    $region29: #{tpu_custom_call.1} parent=1 // pred_fallthru
      _
    // Predicated region
    $region30: #{tpu_custom_call.1} parent=1 // pred_check
      _
    $region31: #{tpu_custom_call.1} parent=1 // pred_check_branch
      %77 = sbr.rel (0) target = $region33
    $region32: #{tpu_custom_call.1} parent=1 // pred_region
      %79 = dma.done [#allocation6], 512
    $region33: #{tpu_custom_call.1} parent=1 // pred_fallthru
      _
    // Predicated region
    $region34: #{tpu_custom_call.1} parent=1 // pred_check
      _
    $region35: #{tpu_custom_call.1} parent=1 // pred_check_branch
      %81 = sbr.rel (0) target = $region37
    $region36: #{tpu_custom_call.1} parent=1 // pred_region
      %83 = dma.done [#allocation9], 512
    $region37: #{tpu_custom_call.1} parent=1 // pred_fallthru
      _
    %v84 = vld [vmem:[#allocation2] sm:$0xff]
    %v85 = vld [vmem:[#allocation2 + $0x8] sm:$0xff]
    %v86 = vld [vmem:[#allocation7] sm:$0xff]
    %v87 = vld [vmem:[#allocation7 + $0x8] sm:$0xff]
    %v88 = vld [vmem:[#allocation7 + $0x10] sm:$0xff]
    %v89 = vld [vmem:[#allocation7 + $0x18] sm:$0xff]
    %v90 = vld [vmem:[#allocation5] sm:$0xff]
    %v91 = vld [vmem:[#allocation5 + $0x8] sm:$0xff]
    %v92 = vld [vmem:[#allocation8] sm:$0xff]
    %v93 = vld [vmem:[#allocation8 + $0x8] sm:$0xff]
    %v94 = vld [vmem:[#allocation8 + $0x10] sm:$0xff]
    %v95 = vld [vmem:[#allocation8 + $0x18] sm:$0xff]
    %vm96 = vcmask 261120
    %v98 = vsel %vm96, %v90, 0
    %v101 = vsel %vm96, %v91, 0
    %103 = vmatpush.msra.mxu0 0.0
    %104 = vmatpush.msra.mxu0 0.0
    %105 = vmatpush.msra.mxu0 0.0
    %106 = vmatpush.msra.mxu0 0.0
    %107 = vmatpush.msra.mxu0 0.0
    %108 = vmatpush.msra.mxu0 0.0
    %109 = vmatpush.msra.mxu0 0.0
    %110 = vmatpush.msra.mxu0 0.0
    %111 = vmatpush.msra.mxu0 0.0
    %112 = vmatpush.msra.mxu0 0.0
    %113 = vmatpush.msra.mxu0 0.0
    %114 = vmatpush.msra.mxu0 0.0
    %v115 = vand.u32 %v95, 4294901760
    %116 = vmatpush.msra.mxu0 %v115
    %v117 = vand.u32 %v94, 4294901760
    %118 = vmatpush.msra.mxu0 %v117
    %v119 = vand.u32 %v93, 4294901760
    %120 = vmatpush.msra.mxu0 %v119
    %v121 = vand.u32 %v92, 4294901760
    %122 = vmatpush.msra.mxu0 %v121
    %v123 = vand.u32 %v98, 4294901760
    %v124 = vsub.f32 %v98, %v123
    %v125 = vand.u32 %v124, 4294901760
    %v126 = vsub.f32 %v124, %v125
    %v127 = vand.u32 %v126, 4294901760
    %128 = vmatmul.f32.gmra.mxu0 %v127
    %v129 = vpop.f32.mrf.mxu0
    %v130 = vadd.f32 0.0, %v129
    %v131 = vand.u32 %v101, 4294901760
    %v132 = vsub.f32 %v101, %v131
    %v133 = vand.u32 %v132, 4294901760
    %v134 = vsub.f32 %v132, %v133
    %v135 = vand.u32 %v134, 4294901760
    %136 = vmatmul.f32.gmra.mxu0 %v135
    %v137 = vpop.f32.mrf.mxu0
    %v138 = vadd.f32 0.0, %v137
    %139 = vdwg.mxu0
    %140 = vmatpush.msra.mxu0 0.0
    %141 = vmatpush.msra.mxu0 0.0
    %142 = vmatpush.msra.mxu0 0.0
    %143 = vmatpush.msra.mxu0 0.0
    %144 = vmatpush.msra.mxu0 0.0
    %145 = vmatpush.msra.mxu0 0.0
    %146 = vmatpush.msra.mxu0 0.0
    %147 = vmatpush.msra.mxu0 0.0
    %148 = vmatpush.msra.mxu0 0.0
    %149 = vmatpush.msra.mxu0 0.0
    %150 = vmatpush.msra.mxu0 0.0
    %151 = vmatpush.msra.mxu0 0.0
    %v152 = vand.u32 %v95, 4294901760
    %v153 = vsub.f32 %v95, %v152
    %v154 = vand.u32 %v153, 4294901760
    %v155 = vsub.f32 %v153, %v154
    %v156 = vand.u32 %v155, 4294901760
    %157 = vmatpush.msra.mxu0 %v156
    %v158 = vand.u32 %v94, 4294901760
    %v159 = vsub.f32 %v94, %v158
    %v160 = vand.u32 %v159, 4294901760
    %v161 = vsub.f32 %v159, %v160
    %v162 = vand.u32 %v161, 4294901760
    %163 = vmatpush.msra.mxu0 %v162
    %v164 = vand.u32 %v93, 4294901760
    %v165 = vsub.f32 %v93, %v164
    %v166 = vand.u32 %v165, 4294901760
    %v167 = vsub.f32 %v165, %v166
    %v168 = vand.u32 %v167, 4294901760
    %169 = vmatpush.msra.mxu0 %v168
    %v170 = vand.u32 %v92, 4294901760
    %v171 = vsub.f32 %v92, %v170
    %v172 = vand.u32 %v171, 4294901760
    %v173 = vsub.f32 %v171, %v172
    %v174 = vand.u32 %v173, 4294901760
    %175 = vmatpush.msra.mxu0 %v174
    %v176 = vand.u32 %v98, 4294901760
    %177 = vmatmul.f32.gmra.mxu0 %v176
    %v178 = vpop.f32.mrf.mxu0
    %v179 = vadd.f32 %v130, %v178
    %v180 = vand.u32 %v101, 4294901760
    %181 = vmatmul.f32.gmra.mxu0 %v180
    %v182 = vpop.f32.mrf.mxu0
    %v183 = vadd.f32 %v138, %v182
    %184 = vdwg.mxu0
    %185 = vmatpush.msra.mxu0 0.0
    %186 = vmatpush.msra.mxu0 0.0
    %187 = vmatpush.msra.mxu0 0.0
    %188 = vmatpush.msra.mxu0 0.0
    %189 = vmatpush.msra.mxu0 0.0
    %190 = vmatpush.msra.mxu0 0.0
    %191 = vmatpush.msra.mxu0 0.0
    %192 = vmatpush.msra.mxu0 0.0
    %193 = vmatpush.msra.mxu0 0.0
    %194 = vmatpush.msra.mxu0 0.0
    %195 = vmatpush.msra.mxu0 0.0
    %196 = vmatpush.msra.mxu0 0.0
    %v197 = vand.u32 %v95, 4294901760
    %v198 = vsub.f32 %v95, %v197
    %199 = vmatpush.msra.mxu0 %v198
    %v200 = vand.u32 %v94, 4294901760
    %v201 = vsub.f32 %v94, %v200
    %202 = vmatpush.msra.mxu0 %v201
    %v203 = vand.u32 %v93, 4294901760
    %v204 = vsub.f32 %v93, %v203
    %205 = vmatpush.msra.mxu0 %v204
    %v206 = vand.u32 %v92, 4294901760
    %v207 = vsub.f32 %v92, %v206
    %208 = vmatpush.msra.mxu0 %v207
    %v209 = vand.u32 %v98, 4294901760
    %v210 = vsub.f32 %v98, %v209
    %211 = vmatmul.f32.gmra.mxu0 %v210
    %v212 = vpop.f32.mrf.mxu0
    %v213 = vadd.f32 %v179, %v212
    %v214 = vand.u32 %v101, 4294901760
    %v215 = vsub.f32 %v101, %v214
    %216 = vmatmul.f32.gmra.mxu0 %v215
    %v217 = vpop.f32.mrf.mxu0
    %v218 = vadd.f32 %v183, %v217
    %219 = vdwg.mxu0
    %220 = vmatpush.msra.mxu0 0.0
    %221 = vmatpush.msra.mxu0 0.0
    %222 = vmatpush.msra.mxu0 0.0
    %223 = vmatpush.msra.mxu0 0.0
    %224 = vmatpush.msra.mxu0 0.0
    %225 = vmatpush.msra.mxu0 0.0
    %226 = vmatpush.msra.mxu0 0.0
    %227 = vmatpush.msra.mxu0 0.0
    %228 = vmatpush.msra.mxu0 0.0
    %229 = vmatpush.msra.mxu0 0.0
    %230 = vmatpush.msra.mxu0 0.0
    %231 = vmatpush.msra.mxu0 0.0
    %v232 = vand.u32 %v95, 4294901760
    %233 = vmatpush.msra.mxu0 %v232
    %v234 = vand.u32 %v94, 4294901760
    %235 = vmatpush.msra.mxu0 %v234
    %v236 = vand.u32 %v93, 4294901760
    %237 = vmatpush.msra.mxu0 %v236
    %v238 = vand.u32 %v92, 4294901760
    %239 = vmatpush.msra.mxu0 %v238
    %v240 = vand.u32 %v98, 4294901760
    %v241 = vsub.f32 %v98, %v240
    %v242 = vand.u32 %v241, 4294901760
    %243 = vmatmul.f32.gmra.mxu0 %v242
    %v244 = vpop.f32.mrf.mxu0
    %v245 = vadd.f32 %v213, %v244
    %v246 = vand.u32 %v101, 4294901760
    %v247 = vsub.f32 %v101, %v246
    %v248 = vand.u32 %v247, 4294901760
    %249 = vmatmul.f32.gmra.mxu0 %v248
    %v250 = vpop.f32.mrf.mxu0
    %v251 = vadd.f32 %v218, %v250
    %252 = vdwg.mxu0
    %253 = vmatpush.msra.mxu0 0.0
    %254 = vmatpush.msra.mxu0 0.0
    %255 = vmatpush.msra.mxu0 0.0
    %256 = vmatpush.msra.mxu0 0.0
    %257 = vmatpush.msra.mxu0 0.0
    %258 = vmatpush.msra.mxu0 0.0
    %259 = vmatpush.msra.mxu0 0.0
    %260 = vmatpush.msra.mxu0 0.0
    %261 = vmatpush.msra.mxu0 0.0
    %262 = vmatpush.msra.mxu0 0.0
    %263 = vmatpush.msra.mxu0 0.0
    %264 = vmatpush.msra.mxu0 0.0
    %v265 = vand.u32 %v95, 4294901760
    %v266 = vsub.f32 %v95, %v265
    %v267 = vand.u32 %v266, 4294901760
    %268 = vmatpush.msra.mxu0 %v267
    %v269 = vand.u32 %v94, 4294901760
    %v270 = vsub.f32 %v94, %v269
    %v271 = vand.u32 %v270, 4294901760
    %272 = vmatpush.msra.mxu0 %v271
    %v273 = vand.u32 %v93, 4294901760
    %v274 = vsub.f32 %v93, %v273
    %v275 = vand.u32 %v274, 4294901760
    %276 = vmatpush.msra.mxu0 %v275
    %v277 = vand.u32 %v92, 4294901760
    %v278 = vsub.f32 %v92, %v277
    %v279 = vand.u32 %v278, 4294901760
    %280 = vmatpush.msra.mxu0 %v279
    %v281 = vand.u32 %v98, 4294901760
    %282 = vmatmul.f32.gmra.mxu0 %v281
    %v283 = vpop.f32.mrf.mxu0
    %v284 = vadd.f32 %v245, %v283
    %v285 = vand.u32 %v101, 4294901760
    %286 = vmatmul.f32.gmra.mxu0 %v285
    %v287 = vpop.f32.mrf.mxu0
    %v288 = vadd.f32 %v251, %v287
    %289 = vdwg.mxu0
    %290 = vmatpush.msra.mxu0 0.0
    %291 = vmatpush.msra.mxu0 0.0
    %292 = vmatpush.msra.mxu0 0.0
    %293 = vmatpush.msra.mxu0 0.0
    %294 = vmatpush.msra.mxu0 0.0
    %295 = vmatpush.msra.mxu0 0.0
    %296 = vmatpush.msra.mxu0 0.0
    %297 = vmatpush.msra.mxu0 0.0
    %298 = vmatpush.msra.mxu0 0.0
    %299 = vmatpush.msra.mxu0 0.0
    %300 = vmatpush.msra.mxu0 0.0
    %301 = vmatpush.msra.mxu0 0.0
    %v302 = vand.u32 %v95, 4294901760
    %303 = vmatpush.msra.mxu0 %v302
    %v304 = vand.u32 %v94, 4294901760
    %305 = vmatpush.msra.mxu0 %v304
    %v306 = vand.u32 %v93, 4294901760
    %307 = vmatpush.msra.mxu0 %v306
    %v308 = vand.u32 %v92, 4294901760
    %309 = vmatpush.msra.mxu0 %v308
    %v310 = vand.u32 %v98, 4294901760
    %311 = vmatmul.f32.gmra.mxu0 %v310
    %v312 = vpop.f32.mrf.mxu0
    %v313 = vadd.f32 %v284, %v312
    %v314 = vand.u32 %v101, 4294901760
    %315 = vmatmul.f32.gmra.mxu0 %v314
    %v316 = vpop.f32.mrf.mxu0
    %v317 = vadd.f32 %v288, %v316
    %318 = vdwg.mxu0
    %v320 = vsel %vm96, %v84, 0
    %v323 = vsel %vm96, %v85, 0
    %325 = vmatpush.msra.mxu0 0.0
    %326 = vmatpush.msra.mxu0 0.0
    %327 = vmatpush.msra.mxu0 0.0
    %328 = vmatpush.msra.mxu0 0.0
    %329 = vmatpush.msra.mxu0 0.0
    %330 = vmatpush.msra.mxu0 0.0
    %331 = vmatpush.msra.mxu0 0.0
    %332 = vmatpush.msra.mxu0 0.0
    %333 = vmatpush.msra.mxu0 0.0
    %334 = vmatpush.msra.mxu0 0.0
    %335 = vmatpush.msra.mxu0 0.0
    %336 = vmatpush.msra.mxu0 0.0
    %v337 = vand.u32 %v89, 4294901760
    %338 = vmatpush.msra.mxu0 %v337
    %v339 = vand.u32 %v88, 4294901760
    %340 = vmatpush.msra.mxu0 %v339
    %v341 = vand.u32 %v87, 4294901760
    %342 = vmatpush.msra.mxu0 %v341
    %v343 = vand.u32 %v86, 4294901760
    %344 = vmatpush.msra.mxu0 %v343
    %v345 = vand.u32 %v320, 4294901760
    %v346 = vsub.f32 %v320, %v345
    %v347 = vand.u32 %v346, 4294901760
    %v348 = vsub.f32 %v346, %v347
    %v349 = vand.u32 %v348, 4294901760
    %350 = vmatmul.f32.gmra.mxu0 %v349
    %v351 = vpop.f32.mrf.mxu0
    %v352 = vadd.f32 %v313, %v351
    %v353 = vand.u32 %v323, 4294901760
    %v354 = vsub.f32 %v323, %v353
    %v355 = vand.u32 %v354, 4294901760
    %v356 = vsub.f32 %v354, %v355
    %v357 = vand.u32 %v356, 4294901760
    %358 = vmatmul.f32.gmra.mxu0 %v357
    %v359 = vpop.f32.mrf.mxu0
    %v360 = vadd.f32 %v317, %v359
    %361 = vdwg.mxu0
    %362 = vmatpush.msra.mxu0 0.0
    %363 = vmatpush.msra.mxu0 0.0
    %364 = vmatpush.msra.mxu0 0.0
    %365 = vmatpush.msra.mxu0 0.0
    %366 = vmatpush.msra.mxu0 0.0
    %367 = vmatpush.msra.mxu0 0.0
    %368 = vmatpush.msra.mxu0 0.0
    %369 = vmatpush.msra.mxu0 0.0
    %370 = vmatpush.msra.mxu0 0.0
    %371 = vmatpush.msra.mxu0 0.0
    %372 = vmatpush.msra.mxu0 0.0
    %373 = vmatpush.msra.mxu0 0.0
    %v374 = vand.u32 %v89, 4294901760
    %v375 = vsub.f32 %v89, %v374
    %v376 = vand.u32 %v375, 4294901760
    %v377 = vsub.f32 %v375, %v376
    %v378 = vand.u32 %v377, 4294901760
    %379 = vmatpush.msra.mxu0 %v378
    %v380 = vand.u32 %v88, 4294901760
    %v381 = vsub.f32 %v88, %v380
    %v382 = vand.u32 %v381, 4294901760
    %v383 = vsub.f32 %v381, %v382
    %v384 = vand.u32 %v383, 4294901760
    %385 = vmatpush.msra.mxu0 %v384
    %v386 = vand.u32 %v87, 4294901760
    %v387 = vsub.f32 %v87, %v386
    %v388 = vand.u32 %v387, 4294901760
    %v389 = vsub.f32 %v387, %v388
    %v390 = vand.u32 %v389, 4294901760
    %391 = vmatpush.msra.mxu0 %v390
    %v392 = vand.u32 %v86, 4294901760
    %v393 = vsub.f32 %v86, %v392
    %v394 = vand.u32 %v393, 4294901760
    %v395 = vsub.f32 %v393, %v394
    %v396 = vand.u32 %v395, 4294901760
    %397 = vmatpush.msra.mxu0 %v396
    %v398 = vand.u32 %v320, 4294901760
    %399 = vmatmul.f32.gmra.mxu0 %v398
    %v400 = vpop.f32.mrf.mxu0
    %v401 = vadd.f32 %v352, %v400
    %v402 = vand.u32 %v323, 4294901760
    %403 = vmatmul.f32.gmra.mxu0 %v402
    %v404 = vpop.f32.mrf.mxu0
    %v405 = vadd.f32 %v360, %v404
    %406 = vdwg.mxu0
    %407 = vmatpush.msra.mxu0 0.0
    %408 = vmatpush.msra.mxu0 0.0
    %409 = vmatpush.msra.mxu0 0.0
    %410 = vmatpush.msra.mxu0 0.0
    %411 = vmatpush.msra.mxu0 0.0
    %412 = vmatpush.msra.mxu0 0.0
    %413 = vmatpush.msra.mxu0 0.0
    %414 = vmatpush.msra.mxu0 0.0
    %415 = vmatpush.msra.mxu0 0.0
    %416 = vmatpush.msra.mxu0 0.0
    %417 = vmatpush.msra.mxu0 0.0
    %418 = vmatpush.msra.mxu0 0.0
    %v419 = vand.u32 %v89, 4294901760
    %v420 = vsub.f32 %v89, %v419
    %421 = vmatpush.msra.mxu0 %v420
    %v422 = vand.u32 %v88, 4294901760
    %v423 = vsub.f32 %v88, %v422
    %424 = vmatpush.msra.mxu0 %v423
    %v425 = vand.u32 %v87, 4294901760
    %v426 = vsub.f32 %v87, %v425
    %427 = vmatpush.msra.mxu0 %v426
    %v428 = vand.u32 %v86, 4294901760
    %v429 = vsub.f32 %v86, %v428
    %430 = vmatpush.msra.mxu0 %v429
    %v431 = vand.u32 %v320, 4294901760
    %v432 = vsub.f32 %v320, %v431
    %433 = vmatmul.f32.gmra.mxu0 %v432
    %v434 = vpop.f32.mrf.mxu0
    %v435 = vadd.f32 %v401, %v434
    %v436 = vand.u32 %v323, 4294901760
    %v437 = vsub.f32 %v323, %v436
    %438 = vmatmul.f32.gmra.mxu0 %v437
    %v439 = vpop.f32.mrf.mxu0
    %v440 = vadd.f32 %v405, %v439
    %441 = vdwg.mxu0
    %442 = vmatpush.msra.mxu0 0.0
    %443 = vmatpush.msra.mxu0 0.0
    %444 = vmatpush.msra.mxu0 0.0
    %445 = vmatpush.msra.mxu0 0.0
    %446 = vmatpush.msra.mxu0 0.0
    %447 = vmatpush.msra.mxu0 0.0
    %448 = vmatpush.msra.mxu0 0.0
    %449 = vmatpush.msra.mxu0 0.0
    %450 = vmatpush.msra.mxu0 0.0
    %451 = vmatpush.msra.mxu0 0.0
    %452 = vmatpush.msra.mxu0 0.0
    %453 = vmatpush.msra.mxu0 0.0
    %v454 = vand.u32 %v89, 4294901760
    %455 = vmatpush.msra.mxu0 %v454
    %v456 = vand.u32 %v88, 4294901760
    %457 = vmatpush.msra.mxu0 %v456
    %v458 = vand.u32 %v87, 4294901760
    %459 = vmatpush.msra.mxu0 %v458
    %v460 = vand.u32 %v86, 4294901760
    %461 = vmatpush.msra.mxu0 %v460
    %v462 = vand.u32 %v320, 4294901760
    %v463 = vsub.f32 %v320, %v462
    %v464 = vand.u32 %v463, 4294901760
    %465 = vmatmul.f32.gmra.mxu0 %v464
    %v466 = vpop.f32.mrf.mxu0
    %v467 = vadd.f32 %v435, %v466
    %v468 = vand.u32 %v323, 4294901760
    %v469 = vsub.f32 %v323, %v468
    %v470 = vand.u32 %v469, 4294901760
    %471 = vmatmul.f32.gmra.mxu0 %v470
    %v472 = vpop.f32.mrf.mxu0
    %v473 = vadd.f32 %v440, %v472
    %474 = vdwg.mxu0
    %475 = vmatpush.msra.mxu0 0.0
    %476 = vmatpush.msra.mxu0 0.0
    %477 = vmatpush.msra.mxu0 0.0
    %478 = vmatpush.msra.mxu0 0.0
    %479 = vmatpush.msra.mxu0 0.0
    %480 = vmatpush.msra.mxu0 0.0
    %481 = vmatpush.msra.mxu0 0.0
    %482 = vmatpush.msra.mxu0 0.0
    %483 = vmatpush.msra.mxu0 0.0
    %484 = vmatpush.msra.mxu0 0.0
    %485 = vmatpush.msra.mxu0 0.0
    %486 = vmatpush.msra.mxu0 0.0
    %v487 = vand.u32 %v89, 4294901760
    %v488 = vsub.f32 %v89, %v487
    %v489 = vand.u32 %v488, 4294901760
    %490 = vmatpush.msra.mxu0 %v489
    %v491 = vand.u32 %v88, 4294901760
    %v492 = vsub.f32 %v88, %v491
    %v493 = vand.u32 %v492, 4294901760
    %494 = vmatpush.msra.mxu0 %v493
    %v495 = vand.u32 %v87, 4294901760
    %v496 = vsub.f32 %v87, %v495
    %v497 = vand.u32 %v496, 4294901760
    %498 = vmatpush.msra.mxu0 %v497
    %v499 = vand.u32 %v86, 4294901760
    %v500 = vsub.f32 %v86, %v499
    %v501 = vand.u32 %v500, 4294901760
    %502 = vmatpush.msra.mxu0 %v501
    %v503 = vand.u32 %v320, 4294901760
    %504 = vmatmul.f32.gmra.mxu0 %v503
    %v505 = vpop.f32.mrf.mxu0
    %v506 = vadd.f32 %v467, %v505
    %v507 = vand.u32 %v323, 4294901760
    %508 = vmatmul.f32.gmra.mxu0 %v507
    %v509 = vpop.f32.mrf.mxu0
    %v510 = vadd.f32 %v473, %v509
    %511 = vdwg.mxu0
    %512 = vmatpush.msra.mxu0 0.0
    %513 = vmatpush.msra.mxu0 0.0
    %514 = vmatpush.msra.mxu0 0.0
    %515 = vmatpush.msra.mxu0 0.0
    %516 = vmatpush.msra.mxu0 0.0
    %517 = vmatpush.msra.mxu0 0.0
    %518 = vmatpush.msra.mxu0 0.0
    %519 = vmatpush.msra.mxu0 0.0
    %520 = vmatpush.msra.mxu0 0.0
    %521 = vmatpush.msra.mxu0 0.0
    %522 = vmatpush.msra.mxu0 0.0
    %523 = vmatpush.msra.mxu0 0.0
    %v524 = vand.u32 %v89, 4294901760
    %525 = vmatpush.msra.mxu0 %v524
    %v526 = vand.u32 %v88, 4294901760
    %527 = vmatpush.msra.mxu0 %v526
    %v528 = vand.u32 %v87, 4294901760
    %529 = vmatpush.msra.mxu0 %v528
    %v530 = vand.u32 %v86, 4294901760
    %531 = vmatpush.msra.mxu0 %v530
    %v532 = vand.u32 %v320, 4294901760
    %533 = vmatmul.f32.gmra.mxu0 %v532
    %v534 = vpop.f32.mrf.mxu0
    %v535 = vadd.f32 %v506, %v534
    %v536 = vand.u32 %v323, 4294901760
    %537 = vmatmul.f32.gmra.mxu0 %v536
    %v538 = vpop.f32.mrf.mxu0
    %v539 = vadd.f32 %v510, %v538
    %540 = vdwg.mxu0
    %v541 = vld [vmem:[%s4] sm:$0x1]
    %v543 = vperm.slane %v541, 0
    %v545 = vadd.f32 %v535, %v543
    %v546 = vadd.f32 %v539, %v543
    %547 = vst.msk [vmem:[#allocation10] sm:$0xff] %vm96, %v545
    %548 = vst.msk [vmem:[#allocation10 + $0x8] sm:$0xff] %vm96, %v546
    // Predicated region
    $region38: #{tpu_custom_call.1} parent=1 // pred_check
      _
    $region39: #{tpu_custom_call.1} parent=1 // pred_check_branch
      %550 = sbr.rel (0) target = $region41
    $region40: #{tpu_custom_call.1} parent=1 // pred_region
      %552 = vsyncadd [#allocation4], 0
      %s553 = sshll.u32 [#allocation10], 4
      %s554 = int_to_ptr.vmem [resolvable:$true] %s553
      %s555 = sshll.u32 %s5, 4
      %s556 = int_to_ptr.hbm [resolvable:$true] %s555
      %561 = dma.vmem_to_hbm [thread:$0]  %s554, 256, %s556, [#allocation4], 128, 128, 8
    $region41: #{tpu_custom_call.1} parent=1 // pred_fallthru
      _
    // Predicated region
    $region42: #{tpu_custom_call.1} parent=1 // pred_check
      _
    $region43: #{tpu_custom_call.1} parent=1 // pred_check_branch
      %563 = sbr.rel (0) target = $region45
    $region44: #{tpu_custom_call.1} parent=1 // pred_region
      %565 = dma.done [#allocation4], 256
    $region45: #{tpu_custom_call.1} parent=1 // pred_fallthru
      _
    %566 = vsyncpa [#allocation3], 1
    %567 = vsyncpa [#allocation6], 1
    %568 = vsyncpa [#allocation9], 1
    %569 = vsyncpa [#allocation4], 1

</llo_original>
